<compile_context>
chip_gen: v7x
topology: tpu7x:2x2x1
jax: 0.10.0
libtpu: 0.0.40
codegen_flags: <defaults>
</compile_context>

<pallas_src>
import functools
import math

import jax
import jax.numpy as jnp
from jax import lax
from jax.experimental import pallas as pl
from jax.experimental.pallas import tpu as pltpu


# --------------------------------------------------------------------------
# Helpers
# --------------------------------------------------------------------------
def _vmem_capacity_bytes():
    """Physical per-core VMEM (falls back to a conservative v7x-sized 64 MiB)."""
    try:
        return int(pltpu.get_tpu_info().vmem_capacity_bytes)
    except Exception:
        return 64 * 1024 * 1024


def _vmem_limit_bytes(capacity):
    # Leave ~25% headroom for Mosaic internal scratch, semaphores and the
    # double-buffered in/out blocks.
    return int(capacity * 3 // 4)


def _pick_tile(size, preferred, multiple=8):
    """Largest divisor of `size` that is <= `preferred` and a multiple of
    `multiple` (sublane count).  Falls back to the full size only if no such
    divisor exists -- the only other legal block shape per the (8,128)-or-full
    BlockSpec rule."""
    cap = min(preferred, size)
    for cand in range(cap, 0, -1):
        if size % cand == 0 and cand % multiple == 0:
            return cand
    return size


# --------------------------------------------------------------------------
# Pass 1: fused Q/K/V projection (x and weights read exactly once)
# --------------------------------------------------------------------------
def _qkv_proj_kernel(x_ref, wq_ref, wk_ref, wv_ref, q_ref, k_ref, v_ref, *, scale):
    x = x_ref[...]
    q = jnp.dot(x, wq_ref[...], preferred_element_type=jnp.float32)
    q_ref[...] = (q * scale).astype(q_ref.dtype)          # fold 1/sqrt(d_out) here
    k_ref[...] = jnp.dot(x, wk_ref[...],
                         preferred_element_type=jnp.float32).astype(k_ref.dtype)
    v_ref[...] = jnp.dot(x, wv_ref[...],
                         preferred_element_type=jnp.float32).astype(v_ref.dtype)


# --------------------------------------------------------------------------
# Pass 2: flash attention over the projected Q / K / V
# --------------------------------------------------------------------------
def _flash_attention_kernel(q_ref, k_ref, v_ref, o_ref, m_scr, l_scr, acc_scr):
    ki = pl.program_id(1)

    @pl.when(ki == 0)
    def _():
        m_scr[...] = jnp.full_like(m_scr, -jnp.inf)
        l_scr[...] = jnp.zeros_like(l_scr)
        acc_scr[...] = jnp.zeros_like(acc_scr)

    # scores = q @ k^T : contract the last (feature) dims directly on the MXU
    # (no explicit transpose materialized; the XLU is reserved for the
    # row max / row sum reductions below).
    s = lax.dot_general(q_ref[...], k_ref[...],
                        dimension_numbers=(((1,), (1,)), ((), ())),
                        preferred_element_type=jnp.float32)          # [tq, tk]

    # online softmax update (f32 state throughout).
    m_prev = m_scr[...]
    m_new = jnp.maximum(m_prev, jnp.max(s, axis=-1, keepdims=True))
    alpha = jnp.exp(m_prev - m_new)
    p = jnp.exp(s - m_new)
    l_scr[...] = alpha * l_scr[...] + jnp.sum(p, axis=-1, keepdims=True)
    acc_scr[...] = alpha * acc_scr[...] + jnp.dot(
        p.astype(v_ref.dtype), v_ref[...], preferred_element_type=jnp.float32)
    m_scr[...] = m_new

    @pl.when(ki == pl.num_programs(1) - 1)
    def _():
        l = l_scr[...]
        r = pl.reciprocal(l, approx=True)   # EUP slot (free next to the exps)
        r = r * (2.0 - l * r)               # one Newton step -> ~1e-7 rel err
        o_ref[...] = (acc_scr[...] * r).astype(o_ref.dtype)


# --------------------------------------------------------------------------
# Wrapper matching SelfAttention_v1.forward  (x: [seq, d_in])
# --------------------------------------------------------------------------
def self_attention_v1(x, w_query, w_key, w_value, *,
                      q_tile=None, kv_tile=None, compute_dtype=None):
    seq, d_in = x.shape
    d_out = w_query.shape[1]
    cdtype = x.dtype if compute_dtype is None else jnp.dtype(compute_dtype)

    capacity = _vmem_capacity_bytes()
    vmem_limit = _vmem_limit_bytes(capacity)
    small_vmem = capacity <= 64 * 1024 * 1024        # v7x-class budget
    if q_tile is None:
        q_tile = 256
    if kv_tile is None:
        kv_tile = 256 if small_vmem else 512

    scale = 1.0 / math.sqrt(float(d_out))

    # ---------------- pass 1: project Q (scaled), K, V once ----------------
    ts = _pick_tile(seq, max(q_tile, kv_tile))
    w_vmem_spec = pl.BlockSpec(memory_space=pltpu.MemorySpace.VMEM)  # whole array, 1 buffer
    qkv = pl.pallas_call(
        functools.partial(_qkv_proj_kernel, scale=scale),
        out_shape=(
            jax.ShapeDtypeStruct((seq, d_out), cdtype),
            jax.ShapeDtypeStruct((seq, d_out), cdtype),
            jax.ShapeDtypeStruct((seq, d_out), cdtype),
        ),
        grid_spec=pltpu.PrefetchScalarGridSpec(
            num_scalar_prefetch=0,
            grid=(seq // ts,),
            in_specs=[
                pl.BlockSpec((ts, d_in), lambda i: (i, 0)),   # x tile
                w_vmem_spec, w_vmem_spec, w_vmem_spec,        # W_q, W_k, W_v
            ],
            out_specs=[
                pl.BlockSpec((ts, d_out), lambda i: (i, 0)),
                pl.BlockSpec((ts, d_out), lambda i: (i, 0)),
                pl.BlockSpec((ts, d_out), lambda i: (i, 0)),
            ],
        ),
        compiler_params=pltpu.CompilerParams(
            dimension_semantics=("parallel",),
            vmem_limit_bytes=vmem_limit,
        ),
    )
    q, k, v = qkv(x, w_query, w_key, w_value)

    # ---------------- pass 2: flash attention over q / k / v ----------------
    tq = _pick_tile(seq, q_tile)
    tk = _pick_tile(seq, kv_tile)
    grid = (seq // tq, seq // tk)

    return pl.pallas_call(
        _flash_attention_kernel,
        out_shape=jax.ShapeDtypeStruct((seq, d_out), x.dtype),
        grid_spec=pltpu.PrefetchScalarGridSpec(
            num_scalar_prefetch=0,
            grid=grid,
            in_specs=[
                pl.BlockSpec((tq, d_out), lambda qi, ki: (qi, 0)),   # Q tile
                pl.BlockSpec((tk, d_out), lambda qi, ki: (ki, 0)),   # K tile
                pl.BlockSpec((tk, d_out), lambda qi, ki: (ki, 0)),   # V tile
            ],
            out_specs=pl.BlockSpec((tq, d_out), lambda qi, ki: (qi, 0)),
            scratch_shapes=[
                pltpu.VMEM((tq, 1), jnp.float32),       # running max m
                pltpu.VMEM((tq, 1), jnp.float32),       # running denom l
                pltpu.VMEM((tq, d_out), jnp.float32),   # output accumulator
            ],
        ),
        compiler_params=pltpu.CompilerParams(
            dimension_semantics=("parallel", "arbitrary"),
            vmem_limit_bytes=vmem_limit,
        ),
    )(q, k, v)


def self_attention_ref(x, w_query, w_key, w_value):
    keys = x @ w_key
    queries = x @ w_query
    values = x @ w_value
    scores = queries @ keys.T
    weights = jax.nn.softmax(scores / jnp.sqrt(jnp.float32(keys.shape[-1])), axis=-1)
    return weights @ values


if __name__ == "__main__":
    # Small shapes consistent with the module: seq=8 tokens, d_in=32, d_out=16.
    seq, d_in, d_out = 8, 32, 16
    key = jax.random.PRNGKey(0)
    kx, kq, kk, kval = jax.random.split(key, 4)

    x = jax.random.uniform(kx, (seq, d_in), dtype=jnp.float32)
    # torch.rand(d_in, d_out) -> uniform [0, 1)
    w_query = jax.random.uniform(kq, (d_in, d_out), dtype=jnp.float32)
    w_key = jax.random.uniform(kk, (d_in, d_out), dtype=jnp.float32)
    w_value = jax.random.uniform(kval, (d_in, d_out), dtype=jnp.float32)

    out = self_attention_v1(x, w_query, w_key, w_value)
    out = jax.block_until_ready(out)

    ref = self_attention_ref(x, w_query, w_key, w_value)
    assert out.shape == (seq, d_out)
    assert jnp.allclose(out, ref, atol=1e-5, rtol=1e-5), "mismatch vs reference"

    print("KERNEL_OK")
</pallas_src>

<mosaic_0001>
module attributes {stable_mosaic.version = 11 : i64} {
  func.func @_qkv_proj_kernel(%arg0: i32, %arg1: memref<8x32xf32, #tpu.memory_space<vmem>>, %arg2: memref<32x16xf32, #tpu.memory_space<vmem>>, %arg3: memref<32x16xf32, #tpu.memory_space<vmem>>, %arg4: memref<32x16xf32, #tpu.memory_space<vmem>>, %arg5: memref<8x16xf32, #tpu.memory_space<vmem>>, %arg6: memref<8x16xf32, #tpu.memory_space<vmem>>, %arg7: memref<8x16xf32, #tpu.memory_space<vmem>>) attributes {dimension_semantics = [#tpu.dimension_semantics<parallel>], iteration_bounds = array<i64: 1>, scalar_prefetch = 0 : i64, scratch_operands = 0 : i64, tpu.core_type = #tpu.core_type<tc>, window_params = [{transform_indices = @transform_0, window_bounds = array<i64: 8, 32>}, {pipeline_mode = #tpu.pipeline_mode<synchronous>, transform_indices = @transform_1, window_bounds = array<i64: 32, 16>}, {pipeline_mode = #tpu.pipeline_mode<synchronous>, transform_indices = @transform_2, window_bounds = array<i64: 32, 16>}, {pipeline_mode = #tpu.pipeline_mode<synchronous>, transform_indices = @transform_3, window_bounds = array<i64: 32, 16>}, {transform_indices = @transform_4, window_bounds = array<i64: 8, 16>}, {transform_indices = @transform_5, window_bounds = array<i64: 8, 16>}, {transform_indices = @transform_6, window_bounds = array<i64: 8, 16>}]} {
    %c0 = arith.constant 0 : index
    %c0_0 = arith.constant 0 : index
    %0 = vector.load %arg1[%c0, %c0_0] : memref<8x32xf32, #tpu.memory_space<vmem>>, vector<8x32xf32>
    %c0_1 = arith.constant 0 : index
    %c0_2 = arith.constant 0 : index
    %1 = vector.load %arg2[%c0_1, %c0_2] : memref<32x16xf32, #tpu.memory_space<vmem>>, vector<32x16xf32>
    %cst = arith.constant dense<0.000000e+00> : vector<8x16xf32>
    %2 = tpu.matmul %0, %1, %cst {dimension_numbers = #tpu.dot_dimension_numbers<[1], [0], [0], [1], [0, 0, 1, 1], [], []>} : vector<8x32xf32>, vector<32x16xf32>, vector<8x16xf32> -> vector<8x16xf32>
    %cst_3 = arith.constant 2.500000e-01 : f32
    %3 = vector.broadcast %cst_3 : f32 to vector<8x16xf32>
    %4 = arith.mulf %2, %3 : vector<8x16xf32>
    %c0_4 = arith.constant 0 : index
    %c0_5 = arith.constant 0 : index
    %5 = vector.load %arg5[%c0_4, %c0_5] : memref<8x16xf32, #tpu.memory_space<vmem>>, vector<8x16xf32>
    tpu.vector_store %arg5[%c0_4, %c0_5], %4 {strides = array<i32>} : memref<8x16xf32, #tpu.memory_space<vmem>>, vector<8x16xf32>,
    %c0_6 = arith.constant 0 : index
    %c0_7 = arith.constant 0 : index
    %6 = vector.load %arg3[%c0_6, %c0_7] : memref<32x16xf32, #tpu.memory_space<vmem>>, vector<32x16xf32>
    %cst_8 = arith.constant dense<0.000000e+00> : vector<8x16xf32>
    %7 = tpu.matmul %0, %6, %cst_8 {dimension_numbers = #tpu.dot_dimension_numbers<[1], [0], [0], [1], [0, 0, 1, 1], [], []>} : vector<8x32xf32>, vector<32x16xf32>, vector<8x16xf32> -> vector<8x16xf32>
    %c0_9 = arith.constant 0 : index
    %c0_10 = arith.constant 0 : index
    %8 = vector.load %arg6[%c0_9, %c0_10] : memref<8x16xf32, #tpu.memory_space<vmem>>, vector<8x16xf32>
    tpu.vector_store %arg6[%c0_9, %c0_10], %7 {strides = array<i32>} : memref<8x16xf32, #tpu.memory_space<vmem>>, vector<8x16xf32>,
    %c0_11 = arith.constant 0 : index
    %c0_12 = arith.constant 0 : index
    %9 = vector.load %arg4[%c0_11, %c0_12] : memref<32x16xf32, #tpu.memory_space<vmem>>, vector<32x16xf32>
    %cst_13 = arith.constant dense<0.000000e+00> : vector<8x16xf32>
    %10 = tpu.matmul %0, %9, %cst_13 {dimension_numbers = #tpu.dot_dimension_numbers<[1], [0], [0], [1], [0, 0, 1, 1], [], []>} : vector<8x32xf32>, vector<32x16xf32>, vector<8x16xf32> -> vector<8x16xf32>
    %c0_14 = arith.constant 0 : index
    %c0_15 = arith.constant 0 : index
    %11 = vector.load %arg7[%c0_14, %c0_15] : memref<8x16xf32, #tpu.memory_space<vmem>>, vector<8x16xf32>
    tpu.vector_store %arg7[%c0_14, %c0_15], %10 {strides = array<i32>} : memref<8x16xf32, #tpu.memory_space<vmem>>, vector<8x16xf32>,
    return
  }
  func.func @transform_0(%arg0: i32) -> (i32, i32) {
    %c0_i32 = arith.constant 0 : i32
    %c0_i32_0 = arith.constant 0 : i32
    return %arg0, %c0_i32 : i32, i32
  }
  func.func @transform_1(%arg0: i32) -> (i32, i32) {
    %c0_i32 = arith.constant 0 : i32
    %c0_i32_0 = arith.constant 0 : i32
    %c0_i32_1 = arith.constant 0 : i32
    return %c0_i32, %c0_i32_0 : i32, i32
  }
  func.func @transform_2(%arg0: i32) -> (i32, i32) {
    %c0_i32 = arith.constant 0 : i32
    %c0_i32_0 = arith.constant 0 : i32
    %c0_i32_1 = arith.constant 0 : i32
    return %c0_i32, %c0_i32_0 : i32, i32
  }
  func.func @transform_3(%arg0: i32) -> (i32, i32) {
    %c0_i32 = arith.constant 0 : i32
    %c0_i32_0 = arith.constant 0 : i32
    %c0_i32_1 = arith.constant 0 : i32
    return %c0_i32, %c0_i32_0 : i32, i32
  }
  func.func @transform_4(%arg0: i32) -> (i32, i32) {
    %c0_i32 = arith.constant 0 : i32
    %c0_i32_0 = arith.constant 0 : i32
    return %arg0, %c0_i32 : i32, i32
  }
  func.func @transform_5(%arg0: i32) -> (i32, i32) {
    %c0_i32 = arith.constant 0 : i32
    %c0_i32_0 = arith.constant 0 : i32
    return %arg0, %c0_i32 : i32, i32
  }
  func.func @transform_6(%arg0: i32) -> (i32, i32) {
    %c0_i32 = arith.constant 0 : i32
    %c0_i32_0 = arith.constant 0 : i32
    return %arg0, %c0_i32 : i32, i32
  }
}

</mosaic_0001>

<llo_original>
// kernel: tpu_custom_call.1
$region0: #{tpu_custom_call.1}
  #allocation0 [shape = 'u32[]', space=smem, size = 0x4, offset = 0x4, fixed_abs, tag = 'smem constant byte address 0x4 - core index']
  #allocation1 [shape = 'u32[144,128]{1,0:T(1,128)}', space=vmem, size = 0x12000, scoped, tag = 'internal scratch']
  %s0 = inlined_call_operand.vmem [shape: f32[8,32], index: 0, kind: input, shape index: {}]
  %s1 = inlined_call_operand.vmem [shape: f32[32,16], index: 1, kind: input, shape index: {}]
  %s2 = inlined_call_operand.vmem [shape: f32[32,16], index: 2, kind: input, shape index: {}]
  %s3 = inlined_call_operand.vmem [shape: f32[32,16], index: 3, kind: input, shape index: {}]
  %s4 = inlined_call_operand.hbm [shape: f32[8,16], index: 4, kind: output, shape index: {0}]
  %s5 = inlined_call_operand.hbm [shape: f32[8,16], index: 5, kind: output, shape index: {1}]
  %s6 = inlined_call_operand.hbm [shape: f32[8,16], index: 6, kind: output, shape index: {2}]
  %7 = xla_tuple %s4, %s5, %s6
  %s8 = sld [smem:[#allocation0]]
  $region42: #{tpu_custom_call.1} parent=0
    _
  %s10 = ssub.s32 1, %s8
  %s11 = scalar_select 0, %s10, %s8
  $region1: #{tpu_custom_call.1} parent=0
    #allocation2 [shape = 'u8[4096]{0}', space=vmem, size = 0x1000, scoped, tag = 'output window, operand 0, single buffered']
    #allocation3 [shape = 's32[1]{0}', space=sflag, size = 0x4, scoped, tag = 'scoped memory for tpu_custom_call.1']
    #allocation4 [shape = 'u8[4096]{0}', space=vmem, size = 0x1000, scoped, tag = 'output window, operand 1, single buffered']
    #allocation5 [shape = 's32[1]{0}', space=sflag, size = 0x4, scoped, tag = 'scoped memory for tpu_custom_call.1']
    #allocation6 [shape = 'u8[4096]{0}', space=vmem, size = 0x1000, scoped, tag = 'output window, operand 2, single buffered']
    %12 = vsyncpa [#allocation3], 0
    %13 = vsyncpa [#allocation5], 0
    // Predicated region
    $region2: #{tpu_custom_call.1} parent=1 // pred_check
      _
    $region3: #{tpu_custom_call.1} parent=1 // pred_check_branch
      %15 = sbr.rel (0) target = $region5
    $region4: #{tpu_custom_call.1} parent=1 // pred_region
      _
    $region5: #{tpu_custom_call.1} parent=1 // pred_fallthru
      _
    // Predicated region
    $region6: #{tpu_custom_call.1} parent=1 // pred_check
      _
    $region7: #{tpu_custom_call.1} parent=1 // pred_check_branch
      %17 = sbr.rel (0) target = $region9
    $region8: #{tpu_custom_call.1} parent=1 // pred_region
      _
    $region9: #{tpu_custom_call.1} parent=1 // pred_fallthru
      _
    // Predicated region
    $region10: #{tpu_custom_call.1} parent=1 // pred_check
      _
    $region11: #{tpu_custom_call.1} parent=1 // pred_check_branch
      %19 = sbr.rel (0) target = $region13
    $region12: #{tpu_custom_call.1} parent=1 // pred_region
      _
    $region13: #{tpu_custom_call.1} parent=1 // pred_fallthru
      _
    // Predicated region
    $region14: #{tpu_custom_call.1} parent=1 // pred_check
      _
    $region15: #{tpu_custom_call.1} parent=1 // pred_check_branch
      %21 = sbr.rel (0) target = $region17
    $region16: #{tpu_custom_call.1} parent=1 // pred_region
      _
    $region17: #{tpu_custom_call.1} parent=1 // pred_fallthru
      _
    %v22 = vld [vmem:[%s0] sm:$0xff]
    %v23 = vld [vmem:[%s1] sm:$0xff]
    %v24 = vld [vmem:[%s1 + $0x8] sm:$0xff]
    %v25 = vld [vmem:[%s1 + $0x10] sm:$0xff]
    %v26 = vld [vmem:[%s1 + $0x18] sm:$0xff]
    %vm27 = vcmask 261120
    %v29 = vsel %vm27, %v22, 0
    %31 = vmatprep.subr.mxu0 0.0
    %32 = vmatpush1.msra.mxu0 %v23
    %33 = vmatprep.subr.mxu0 0.0
    %34 = vmatpush1.msra.mxu0 %v24
    %35 = vmatprep.subr.mxu0 0.0
    %36 = vmatpush1.msra.mxu0 %v25
    %37 = vmatprep.subr.mxu0 0.0
    %38 = vmatpush1.msra.mxu0 %v26
    %39 = vmatprep.subr.mxu0 0.0
    %40 = vmatpush1.msra.mxu0 0.0
    %41 = vmatprep.subr.mxu0 0.0
    %42 = vmatpush1.msra.mxu0 0.0
    %43 = vmatprep.subr.mxu0 0.0
    %44 = vmatpush1.msra.mxu0 0.0
    %45 = vmatprep.subr.mxu0 0.0
    %46 = vmatpush1.msra.mxu0 0.0
    %47 = vmatprep.subr.mxu0 0.0
    %48 = vmatpush1.msra.mxu0 0.0
    %49 = vmatprep.subr.mxu0 0.0
    %50 = vmatpush1.msra.mxu0 0.0
    %51 = vmatprep.subr.mxu0 0.0
    %52 = vmatpush1.msra.mxu0 0.0
    %53 = vmatprep.subr.mxu0 0.0
    %54 = vmatpush1.msra.mxu0 0.0
    %55 = vmatprep.subr.mxu0 0.0
    %56 = vmatpush1.msra.mxu0 0.0
    %57 = vmatprep.subr.mxu0 0.0
    %58 = vmatpush1.msra.mxu0 0.0
    %59 = vmatprep.subr.mxu0 0.0
    %60 = vmatpush1.msra.mxu0 0.0
    %61 = vmatprep.subr.mxu0 0.0
    %62 = vmatpush1.msra.mxu0 0.0
    %63 = vmatprep.subr.mxu0 0.0
    %64 = vmatpush1.msra.mxu0 0.0
    %65 = vmatprep.subr.mxu0 0.0
    %66 = vmatpush1.msra.mxu0 0.0
    %67 = vmatprep.subr.mxu0 0.0
    %68 = vmatpush1.msra.mxu0 0.0
    %69 = vmatprep.subr.mxu0 0.0
    %70 = vmatpush1.msra.mxu0 0.0
    %71 = vmatprep.subr.mxu0 0.0
    %72 = vmatpush1.msra.mxu0 0.0
    %73 = vmatprep.subr.mxu0 0.0
    %74 = vmatpush1.msra.mxu0 0.0
    %75 = vmatprep.subr.mxu0 0.0
    %76 = vmatpush1.msra.mxu0 0.0
    %77 = vmatprep.subr.mxu0 0.0
    %78 = vmatpush1.msra.mxu0 0.0
    %79 = vmatprep.subr.mxu0 0.0
    %80 = vmatpush1.msra.mxu0 0.0
    %81 = vmatprep.subr.mxu0 0.0
    %82 = vmatpush1.msra.mxu0 0.0
    %83 = vmatprep.subr.mxu0 0.0
    %84 = vmatpush1.msra.mxu0 0.0
    %85 = vmatprep.subr.mxu0 0.0
    %86 = vmatpush1.msra.mxu0 0.0
    %87 = vmatprep.subr.mxu0 0.0
    %88 = vmatpush1.msra.mxu0 0.0
    %89 = vmatprep.subr.mxu0 0.0
    %90 = vmatpush1.msra.mxu0 0.0
    %91 = vmatprep.subr.mxu0 0.0
    %92 = vmatpush1.msra.mxu0 0.0
    %93 = vmatprep.subr.mxu0 0.0
    %94 = vmatpush1.msra.mxu0 0.0
    %95 = vmatprep.mubr.f32.mxu0 0.0
    %96 = vmatmul.mubr.f32.gmra.mrb[0].mxu0 %v29
    %v97 = vpop.f32.mrb[0].mxu0
    %v98 = vadd.f32 0.0, %v97
    %v99 = vpop.f32.mrb[0].mxu0
    %100 = vdwg.mxu0
    %v101 = vmul.f32 %v98, 0.25
    %vm102 = vcmask 130048
    %103 = vst.msk [vmem:[#allocation2] sm:$0xff] %vm102, %v101
    %v104 = vld [vmem:[%s2] sm:$0xff]
    %v105 = vld [vmem:[%s2 + $0x8] sm:$0xff]
    %v106 = vld [vmem:[%s2 + $0x10] sm:$0xff]
    %v107 = vld [vmem:[%s2 + $0x18] sm:$0xff]
    %108 = vmatprep.subr.mxu0 0.0
    %109 = vmatpush1.msra.mxu0 %v104
    %110 = vmatprep.subr.mxu0 0.0
    %111 = vmatpush1.msra.mxu0 %v105
    %112 = vmatprep.subr.mxu0 0.0
    %113 = vmatpush1.msra.mxu0 %v106
    %114 = vmatprep.subr.mxu0 0.0
    %115 = vmatpush1.msra.mxu0 %v107
    %116 = vmatprep.subr.mxu0 0.0
    %117 = vmatpush1.msra.mxu0 0.0
    %118 = vmatprep.subr.mxu0 0.0
    %119 = vmatpush1.msra.mxu0 0.0
    %120 = vmatprep.subr.mxu0 0.0
    %121 = vmatpush1.msra.mxu0 0.0
    %122 = vmatprep.subr.mxu0 0.0
    %123 = vmatpush1.msra.mxu0 0.0
    %124 = vmatprep.subr.mxu0 0.0
    %125 = vmatpush1.msra.mxu0 0.0
    %126 = vmatprep.subr.mxu0 0.0
    %127 = vmatpush1.msra.mxu0 0.0
    %128 = vmatprep.subr.mxu0 0.0
    %129 = vmatpush1.msra.mxu0 0.0
    %130 = vmatprep.subr.mxu0 0.0
    %131 = vmatpush1.msra.mxu0 0.0
    %132 = vmatprep.subr.mxu0 0.0
    %133 = vmatpush1.msra.mxu0 0.0
    %134 = vmatprep.subr.mxu0 0.0
    %135 = vmatpush1.msra.mxu0 0.0
    %136 = vmatprep.subr.mxu0 0.0
    %137 = vmatpush1.msra.mxu0 0.0
    %138 = vmatprep.subr.mxu0 0.0
    %139 = vmatpush1.msra.mxu0 0.0
    %140 = vmatprep.subr.mxu0 0.0
    %141 = vmatpush1.msra.mxu0 0.0
    %142 = vmatprep.subr.mxu0 0.0
    %143 = vmatpush1.msra.mxu0 0.0
    %144 = vmatprep.subr.mxu0 0.0
    %145 = vmatpush1.msra.mxu0 0.0
    %146 = vmatprep.subr.mxu0 0.0
    %147 = vmatpush1.msra.mxu0 0.0
    %148 = vmatprep.subr.mxu0 0.0
    %149 = vmatpush1.msra.mxu0 0.0
    %150 = vmatprep.subr.mxu0 0.0
    %151 = vmatpush1.msra.mxu0 0.0
    %152 = vmatprep.subr.mxu0 0.0
    %153 = vmatpush1.msra.mxu0 0.0
    %154 = vmatprep.subr.mxu0 0.0
    %155 = vmatpush1.msra.mxu0 0.0
    %156 = vmatprep.subr.mxu0 0.0
    %157 = vmatpush1.msra.mxu0 0.0
    %158 = vmatprep.subr.mxu0 0.0
    %159 = vmatpush1.msra.mxu0 0.0
    %160 = vmatprep.subr.mxu0 0.0
    %161 = vmatpush1.msra.mxu0 0.0
    %162 = vmatprep.subr.mxu0 0.0
    %163 = vmatpush1.msra.mxu0 0.0
    %164 = vmatprep.subr.mxu0 0.0
    %165 = vmatpush1.msra.mxu0 0.0
    %166 = vmatprep.subr.mxu0 0.0
    %167 = vmatpush1.msra.mxu0 0.0
    %168 = vmatprep.subr.mxu0 0.0
    %169 = vmatpush1.msra.mxu0 0.0
    %170 = vmatprep.subr.mxu0 0.0
    %171 = vmatpush1.msra.mxu0 0.0
    %172 = vmatprep.mubr.f32.mxu0 0.0
    %173 = vmatmul.mubr.f32.gmra.mrb[0].mxu0 %v29
    %v174 = vpop.f32.mrb[0].mxu0
    %v175 = vadd.f32 0.0, %v174
    %v176 = vpop.f32.mrb[0].mxu0
    %177 = vdwg.mxu0
    %178 = vst.msk [vmem:[#allocation4] sm:$0xff] %vm102, %v175
    %v179 = vld [vmem:[%s3] sm:$0xff]
    %v180 = vld [vmem:[%s3 + $0x8] sm:$0xff]
    %v181 = vld [vmem:[%s3 + $0x10] sm:$0xff]
    %v182 = vld [vmem:[%s3 + $0x18] sm:$0xff]
    %183 = vmatprep.subr.mxu0 0.0
    %184 = vmatpush1.msra.mxu0 %v179
    %185 = vmatprep.subr.mxu0 0.0
    %186 = vmatpush1.msra.mxu0 %v180
    %187 = vmatprep.subr.mxu0 0.0
    %188 = vmatpush1.msra.mxu0 %v181
    %189 = vmatprep.subr.mxu0 0.0
    %190 = vmatpush1.msra.mxu0 %v182
    %191 = vmatprep.subr.mxu0 0.0
    %192 = vmatpush1.msra.mxu0 0.0
    %193 = vmatprep.subr.mxu0 0.0
    %194 = vmatpush1.msra.mxu0 0.0
    %195 = vmatprep.subr.mxu0 0.0
    %196 = vmatpush1.msra.mxu0 0.0
    %197 = vmatprep.subr.mxu0 0.0
    %198 = vmatpush1.msra.mxu0 0.0
    %199 = vmatprep.subr.mxu0 0.0
    %200 = vmatpush1.msra.mxu0 0.0
    %201 = vmatprep.subr.mxu0 0.0
    %202 = vmatpush1.msra.mxu0 0.0
    %203 = vmatprep.subr.mxu0 0.0
    %204 = vmatpush1.msra.mxu0 0.0
    %205 = vmatprep.subr.mxu0 0.0
    %206 = vmatpush1.msra.mxu0 0.0
    %207 = vmatprep.subr.mxu0 0.0
    %208 = vmatpush1.msra.mxu0 0.0
    %209 = vmatprep.subr.mxu0 0.0
    %210 = vmatpush1.msra.mxu0 0.0
    %211 = vmatprep.subr.mxu0 0.0
    %212 = vmatpush1.msra.mxu0 0.0
    %213 = vmatprep.subr.mxu0 0.0
    %214 = vmatpush1.msra.mxu0 0.0
    %215 = vmatprep.subr.mxu0 0.0
    %216 = vmatpush1.msra.mxu0 0.0
    %217 = vmatprep.subr.mxu0 0.0
    %218 = vmatpush1.msra.mxu0 0.0
    %219 = vmatprep.subr.mxu0 0.0
    %220 = vmatpush1.msra.mxu0 0.0
    %221 = vmatprep.subr.mxu0 0.0
    %222 = vmatpush1.msra.mxu0 0.0
    %223 = vmatprep.subr.mxu0 0.0
    %224 = vmatpush1.msra.mxu0 0.0
    %225 = vmatprep.subr.mxu0 0.0
    %226 = vmatpush1.msra.mxu0 0.0
    %227 = vmatprep.subr.mxu0 0.0
    %228 = vmatpush1.msra.mxu0 0.0
    %229 = vmatprep.subr.mxu0 0.0
    %230 = vmatpush1.msra.mxu0 0.0
    %231 = vmatprep.subr.mxu0 0.0
    %232 = vmatpush1.msra.mxu0 0.0
    %233 = vmatprep.subr.mxu0 0.0
    %234 = vmatpush1.msra.mxu0 0.0
    %235 = vmatprep.subr.mxu0 0.0
    %236 = vmatpush1.msra.mxu0 0.0
    %237 = vmatprep.subr.mxu0 0.0
    %238 = vmatpush1.msra.mxu0 0.0
    %239 = vmatprep.subr.mxu0 0.0
    %240 = vmatpush1.msra.mxu0 0.0
    %241 = vmatprep.subr.mxu0 0.0
    %242 = vmatpush1.msra.mxu0 0.0
    %243 = vmatprep.subr.mxu0 0.0
    %244 = vmatpush1.msra.mxu0 0.0
    %245 = vmatprep.subr.mxu0 0.0
    %246 = vmatpush1.msra.mxu0 0.0
    %247 = vmatprep.mubr.f32.mxu0 0.0
    %248 = vmatmul.mubr.f32.gmra.mrb[0].mxu0 %v29
    %v249 = vpop.f32.mrb[0].mxu0
    %v250 = vadd.f32 0.0, %v249
    %v251 = vpop.f32.mrb[0].mxu0
    %252 = vdwg.mxu0
    %253 = vst.msk [vmem:[#allocation6] sm:$0xff] %vm102, %v250
    // Predicated region
    $region18: #{tpu_custom_call.1} parent=1 // pred_check
      _
    $region19: #{tpu_custom_call.1} parent=1 // pred_check_branch
      %255 = sbr.rel (0) target = $region21
    $region20: #{tpu_custom_call.1} parent=1 // pred_region
      %s257 = ssub.s32 128, 128
      %258 = vsyncadd [#allocation3], %s257
      %s260 = sshll.u32 [#allocation2], 4
      %s261 = int_to_ptr.vmem [resolvable:$true] %s260
      %263 = dma.vmem_to_hbm [thread:$0]  %s261, 128, %s4, [#allocation3]
    $region21: #{tpu_custom_call.1} parent=1 // pred_fallthru
      _
    // Predicated region
    $region22: #{tpu_custom_call.1} parent=1 // pred_check
      _
    $region23: #{tpu_custom_call.1} parent=1 // pred_check_branch
      %265 = sbr.rel (0) target = $region25
    $region24: #{tpu_custom_call.1} parent=1 // pred_region
      %s267 = ssub.s32 128, 128
      %268 = vsyncadd [#allocation5], %s267
      %s270 = sshll.u32 [#allocation4], 4
      %s271 = int_to_ptr.vmem [resolvable:$true] %s270
      %273 = dma.vmem_to_hbm [thread:$0]  %s271, 128, %s5, [#allocation5]
    $region25: #{tpu_custom_call.1} parent=1 // pred_fallthru
      _
    // Predicated region
    $region26: #{tpu_custom_call.1} parent=1 // pred_check
      _
    $region27: #{tpu_custom_call.1} parent=1 // pred_check_branch
      %275 = sbr.rel (0) target = $region29
    $region28: #{tpu_custom_call.1} parent=1 // pred_region
      %s277 = ssub.s32 128, 128
      %278 = vsyncadd [#allocation5], %s277
      %s280 = sshll.u32 [#allocation6], 4
      %s281 = int_to_ptr.vmem [resolvable:$true] %s280
      %283 = dma.vmem_to_hbm [thread:$0]  %s281, 128, %s6, [#allocation5]
    $region29: #{tpu_custom_call.1} parent=1 // pred_fallthru
      _
    // Predicated region
    $region30: #{tpu_custom_call.1} parent=1 // pred_check
      _
    $region31: #{tpu_custom_call.1} parent=1 // pred_check_branch
      %285 = sbr.rel (0) target = $region33
    $region32: #{tpu_custom_call.1} parent=1 // pred_region
      %286 = dma.done [#allocation3], 128
    $region33: #{tpu_custom_call.1} parent=1 // pred_fallthru
      _
    // Predicated region
    $region34: #{tpu_custom_call.1} parent=1 // pred_check
      _
    $region35: #{tpu_custom_call.1} parent=1 // pred_check_branch
      %288 = sbr.rel (0) target = $region37
    $region36: #{tpu_custom_call.1} parent=1 // pred_region
      %289 = dma.done [#allocation5], 128
    $region37: #{tpu_custom_call.1} parent=1 // pred_fallthru
      _
    // Predicated region
    $region38: #{tpu_custom_call.1} parent=1 // pred_check
      _
    $region39: #{tpu_custom_call.1} parent=1 // pred_check_branch
      %291 = sbr.rel (0) target = $region41
    $region40: #{tpu_custom_call.1} parent=1 // pred_region
      %292 = dma.done [#allocation5], 128
    $region41: #{tpu_custom_call.1} parent=1 // pred_fallthru
      _
    %293 = vsyncpa [#allocation3], 1
    %294 = vsyncpa [#allocation5], 1

</llo_original>
